<compile_context>
chip_gen: v5e
topology: v5e:2x2
jax: 0.10.0
libtpu: 0.0.40
codegen_flags: <defaults>
</compile_context>

<pallas_src>
import functools

import jax
import jax.numpy as jnp
from jax.experimental import pallas as pl
from jax.experimental.pallas import tpu as pltpu

LANE = 128


# ----------------------------- kernel bodies ------------------------------ #

def _rmsnorm_kernel(x_ref, w_ref, o_ref, *, eps, inv_d):
    # x_ref: (tile_rows, d_pad), w_ref: (1, d_pad)
    x = x_ref[...].astype(jnp.float32)
    # sum/d_true (not jnp.mean): padded lanes are zero and must not change the mean.
    ms = jnp.sum(x * x, axis=-1, keepdims=True) * inv_d
    inv = jax.lax.rsqrt(ms + eps)
    o_ref[...] = (x * inv * w_ref[...].astype(jnp.float32)).astype(o_ref.dtype)


def _rmsnorm_gated_kernel(x_ref, z_ref, w_ref, o_ref, *, eps, inv_d):
    # x_ref, z_ref: (tile_rows, d_pad), w_ref: (1, d_pad)
    x = x_ref[...].astype(jnp.float32)
    z = z_ref[...].astype(jnp.float32)
    x = x * (z * jax.nn.sigmoid(z))  # x * silu(z)
    ms = jnp.sum(x * x, axis=-1, keepdims=True) * inv_d
    inv = jax.lax.rsqrt(ms + eps)
    o_ref[...] = (x * inv * w_ref[...].astype(jnp.float32)).astype(o_ref.dtype)


# ----------------------------- tiling helpers ------------------------------ #

def _sublane_pack(dtype):
    # 8 sublanes for 32-bit, 16 for bf16/f16, 32 for 8-bit dtypes.
    return max(8, 32 // jnp.dtype(dtype).itemsize)


def _round_up(n, m):
    return -(-n // m) * m


def _vmem_capacity_bytes():
    """Per-TensorCore VMEM capacity; conservative (v7x) fallback if unqueryable."""
    try:
        return int(pltpu.get_tpu_info().vmem_capacity_bytes)
    except Exception:
        return 64 * 1024 * 1024


def _working_set_bytes(tr, d_pad, dtype, n_row_streams, n_f32_tiles):
    """Single consistent working-set model used by BOTH sizing helpers.

    n_row_streams: row-tiled arrays (inputs + output), each double-buffered.
    n_f32_tiles:   peak simultaneously-live f32 temporaries in the kernel body
                   (2 for the plain path, 3 for the gated path).
    """
    itemsize = jnp.dtype(dtype).itemsize
    tile = tr * d_pad
    ws = 2 * n_row_streams * tile * itemsize   # double-buffered row streams
    ws += n_f32_tiles * tile * 4               # f32 upcast temporaries at peak
    ws += 2 * d_pad * 4                        # resident (1, d_pad) weight block
    return ws


def _choose_tile_rows(rows, d_pad, dtype, n_row_streams, n_f32_tiles):
    """Large, sublane-aligned row tile sized for ~40% of per-TC VMEM, capped so
    the grid keeps several steps (pipelining + v7x 2-TC sharding)."""
    pack = _sublane_pack(dtype)
    itemsize = jnp.dtype(dtype).itemsize
    budget = int(0.40 * _vmem_capacity_bytes())      # ~25 MiB v7x, ~51 MiB v5e/v6e
    per_row = d_pad * (2 * n_row_streams * itemsize + n_f32_tiles * 4)
    tr = budget // max(per_row, 1)
    tr = min(tr, 1024)                               # amortizes ~0.35us grid-step cost
    # Keep >= ~8 grid steps (floor 256 rows) so DMA prefetch has work and the
    # "parallel" row axis can shard across both TensorCores on v7x.
    multi_step_cap = max(256, _round_up(pl.cdiv(rows, 8), pack))
    tr = min(tr, multi_step_cap)
    tr = min(tr, _round_up(rows, pack))              # never bigger than padded rows
    tr = max(pack, (tr // pack) * pack)              # sublane-aligned
    return int(tr)


def _vmem_limit_bytes(tr, d_pad, dtype, n_row_streams, n_f32_tiles):
    capacity = _vmem_capacity_bytes()
    needed = _working_set_bytes(tr, d_pad, dtype, n_row_streams, n_f32_tiles)
    needed += 2 << 20                                # Mosaic internal scratch headroom
    cap = int(0.70 * capacity)                       # ~45 MiB on v7x, ~90 MiB on v5e/v6e
    return int(min(max(needed, 16 << 20), cap))


# ------------------------------- wrapper ----------------------------------- #

def rmsnorm(x, weight, z=None, *, eps=1e-5, tile_rows=None):
    """RMSNorm over the last dim. x: (..., d); weight: (d,); optional z like x."""
    d = x.shape[-1]
    orig_shape = x.shape
    x2 = x.reshape(-1, d)
    rows = x2.shape[0]
    z2 = None if z is None else z.reshape(-1, d)

    # Lane-density guard: pad d up to a multiple of 128. Padded lanes are zero
    # and the mean uses the true d, so numerics are unchanged; production dims
    # (d % 128 == 0) take the no-pad, fully lane-dense path.
    d_pad = _round_up(d, LANE)
    w2 = weight.reshape(1, d)
    if d_pad != d:
        pad = ((0, 0), (0, d_pad - d))
        x2 = jnp.pad(x2, pad)
        w2 = jnp.pad(w2, pad)
        if z2 is not None:
            z2 = jnp.pad(z2, pad)

    n_row_streams = 2 if z is None else 3   # (x[, z], out) are row-tiled
    n_f32_tiles = 2 if z is None else 3     # peak live f32 temporaries in body
    pack = _sublane_pack(x.dtype)
    if tile_rows is None:
        tr = _choose_tile_rows(rows, d_pad, x.dtype, n_row_streams, n_f32_tiles)
    else:
        tr = max(pack, (int(tile_rows) // pack) * pack)
        tr = min(tr, _round_up(rows, pack))

    grid = (pl.cdiv(rows, tr),)

    row_spec = pl.BlockSpec((tr, d_pad), lambda i: (i, 0))
    w_spec = pl.BlockSpec((1, d_pad), lambda i: (0, 0))   # resident constant block
    out_shape = jax.ShapeDtypeStruct((rows, d_pad), x.dtype)
    cparams = pltpu.CompilerParams(
        dimension_semantics=("parallel",),
        vmem_limit_bytes=_vmem_limit_bytes(tr, d_pad, x.dtype,
                                           n_row_streams, n_f32_tiles),
    )
    inv_d = 1.0 / float(d)

    if z is None:
        out = pl.pallas_call(
            functools.partial(_rmsnorm_kernel, eps=eps, inv_d=inv_d),
            out_shape=out_shape,
            grid_spec=pltpu.PrefetchScalarGridSpec(
                num_scalar_prefetch=0,
                grid=grid,
                in_specs=[row_spec, w_spec],
                out_specs=row_spec,
            ),
            compiler_params=cparams,
        )(x2, w2)
    else:
        out = pl.pallas_call(
            functools.partial(_rmsnorm_gated_kernel, eps=eps, inv_d=inv_d),
            out_shape=out_shape,
            grid_spec=pltpu.PrefetchScalarGridSpec(
                num_scalar_prefetch=0,
                grid=grid,
                in_specs=[row_spec, row_spec, w_spec],
                out_specs=row_spec,
            ),
            compiler_params=cparams,
        )(x2, z2, w2)

    if d_pad != d:
        out = out[:, :d]
    return out.reshape(orig_shape)


# ------------------------------ reference ---------------------------------- #

def _reference(x, weight, z=None, eps=1e-5):
    x = x.astype(jnp.float32)
    if z is not None:
        z = z.astype(jnp.float32)
        x = x * (z * jax.nn.sigmoid(z))
    return x * jax.lax.rsqrt(jnp.mean(x * x, axis=-1, keepdims=True) + eps) * weight


if __name__ == "__main__":
    batch, seq, d = 2, 8, 32
    eps = 1e-5

    key = jax.random.PRNGKey(0)
    kx, kz = jax.random.split(key)
    x = jax.random.normal(kx, (batch, seq, d), dtype=jnp.float32)
    z = jax.random.normal(kz, (batch, seq, d), dtype=jnp.float32)
    # deterministic parameter init: nn.Parameter(torch.ones(d)) -> ones
    weight = jnp.ones((d,), dtype=jnp.float32)

    # path 1: no gating
    out1 = jax.block_until_ready(rmsnorm(x, weight, eps=eps))
    ref1 = _reference(x, weight, eps=eps)
    assert jnp.allclose(out1, ref1, atol=1e-5, rtol=1e-5)

    # path 2: with SiLU gating by z
    out2 = jax.block_until_ready(rmsnorm(x, weight, z=z, eps=eps))
    ref2 = _reference(x, weight, z=z, eps=eps)
    assert jnp.allclose(out2, ref2, atol=1e-5, rtol=1e-5)

    print("KERNEL_OK")
</pallas_src>

<mosaic_0001>
module attributes {stable_mosaic.version = 11 : i64} {
  func.func @_rmsnorm_kernel(%arg0: i32, %arg1: memref<16x128xf32, #tpu.memory_space<vmem>>, %arg2: memref<1x128xf32, #tpu.memory_space<vmem>>, %arg3: memref<16x128xf32, #tpu.memory_space<vmem>>) attributes {dimension_semantics = [#tpu.dimension_semantics<parallel>], iteration_bounds = array<i64: 1>, scalar_prefetch = 0 : i64, scratch_operands = 0 : i64, tpu.core_type = #tpu.core_type<tc>, window_params = [{transform_indices = @transform_0, window_bounds = array<i64: 16, 128>}, {pipeline_mode = #tpu.pipeline_mode<synchronous>, transform_indices = @transform_1, window_bounds = array<i64: 1, 128>}, {transform_indices = @transform_2, window_bounds = array<i64: 16, 128>}]} {
    %c0 = arith.constant 0 : index
    %c0_0 = arith.constant 0 : index
    %0 = vector.load %arg1[%c0, %c0_0] : memref<16x128xf32, #tpu.memory_space<vmem>>, vector<16x128xf32>
    %1 = arith.mulf %0, %0 : vector<16x128xf32>
    %cst = arith.constant dense<0.000000e+00> : vector<16xf32>
    %2 = vector.multi_reduction <add>, %1, %cst [1] : vector<16x128xf32> to vector<16xf32>
    %3 = vector.shape_cast %2 : vector<16xf32> to vector<16x1xf32>
    %cst_1 = arith.constant 3.125000e-02 : f32
    %4 = vector.broadcast %cst_1 : f32 to vector<16x1xf32>
    %5 = arith.mulf %3, %4 : vector<16x1xf32>
    %cst_2 = arith.constant 9.99999974E-6 : f32
    %6 = vector.broadcast %cst_2 : f32 to vector<16x1xf32>
    %7 = arith.addf %5, %6 : vector<16x1xf32>
    %8 = math.rsqrt %7 : vector<16x1xf32>
    %9 = vector.broadcast %8 : vector<16x1xf32> to vector<16x128xf32>
    %10 = arith.mulf %0, %9 : vector<16x128xf32>
    %c0_3 = arith.constant 0 : index
    %c0_4 = arith.constant 0 : index
    %11 = vector.load %arg2[%c0_3, %c0_4] : memref<1x128xf32, #tpu.memory_space<vmem>>, vector<1x128xf32>
    %12 = vector.broadcast %11 : vector<1x128xf32> to vector<16x128xf32>
    %13 = arith.mulf %10, %12 : vector<16x128xf32>
    %c0_5 = arith.constant 0 : index
    %c0_6 = arith.constant 0 : index
    %14 = vector.load %arg3[%c0_5, %c0_6] : memref<16x128xf32, #tpu.memory_space<vmem>>, vector<16x128xf32>
    tpu.vector_store %arg3[%c0_5, %c0_6], %13 {strides = array<i32>} : memref<16x128xf32, #tpu.memory_space<vmem>>, vector<16x128xf32>,
    return
  }
  func.func @transform_0(%arg0: i32) -> (i32, i32) {
    %c0_i32 = arith.constant 0 : i32
    %c0_i32_0 = arith.constant 0 : i32
    return %arg0, %c0_i32 : i32, i32
  }
  func.func @transform_1(%arg0: i32) -> (i32, i32) {
    %c0_i32 = arith.constant 0 : i32
    %c0_i32_0 = arith.constant 0 : i32
    %c0_i32_1 = arith.constant 0 : i32
    return %c0_i32, %c0_i32_0 : i32, i32
  }
  func.func @transform_2(%arg0: i32) -> (i32, i32) {
    %c0_i32 = arith.constant 0 : i32
    %c0_i32_0 = arith.constant 0 : i32
    return %arg0, %c0_i32 : i32, i32
  }
}

</mosaic_0001>

<llo_original>
// kernel: tpu_custom_call.1
$region0: #{tpu_custom_call.1}
  #allocation0 [shape = 'u32[]', space=smem, size = 0x4, offset = 0x4, fixed_abs, tag = 'smem constant byte address 0x4 - core index']
  #allocation1 [shape = 'u32[72,128]{1,0:T(1,128)}', space=vmem, size = 0x9000, scoped, tag = 'internal scratch']
  %s0 = inlined_call_operand.hbm [shape: f32[16,128], index: 0, kind: input, shape index: {}]
  %s1 = inlined_call_operand.hbm [shape: f32[1,128], index: 1, kind: input, shape index: {}]
  %s2 = inlined_call_operand.hbm [shape: f32[16,128], index: 2, kind: output, shape index: {}]
  %s3 = sld [smem:[#allocation0]]
  $region26: #{tpu_custom_call.1} parent=0
    _
  %s5 = ssub.s32 1, %s3
  %s6 = scalar_select 0, %s5, %s3
  $region1: #{tpu_custom_call.1} parent=0
    #allocation2 [shape = 'u8[8192]{0}', space=vmem, size = 0x2000, scoped, tag = 'input window, operand 0, single buffered']
    #allocation3 [shape = 's32[1]{0}', space=sflag, size = 0x4, scoped, tag = 'scoped memory for tpu_custom_call.1']
    #allocation4 [shape = 's32[1]{0}', space=sflag, size = 0x4, scoped, tag = 'scoped memory for tpu_custom_call.1']
    #allocation5 [shape = 'u8[512]{0}', space=vmem, size = 0x400, scoped, tag = 'input window, operand 1, single buffered']
    #allocation6 [shape = 's32[1]{0}', space=sflag, size = 0x4, scoped, tag = 'scoped memory for tpu_custom_call.1']
    #allocation7 [shape = 'u8[8192]{0}', space=vmem, size = 0x2000, scoped, tag = 'output window, operand 0, single buffered']
    %7 = vsyncpa [#allocation3], 0
    %8 = vsyncpa [#allocation6], 0
    %9 = vsyncpa [#allocation4], 0
    // Predicated region
    $region2: #{tpu_custom_call.1} parent=1 // pred_check
      _
    $region3: #{tpu_custom_call.1} parent=1 // pred_check_branch
      %11 = sbr.rel (0) target = $region5
    $region4: #{tpu_custom_call.1} parent=1 // pred_region
      %13 = vsyncadd [#allocation3], 0
      %s14 = sshll.u32 %s0, 4
      %s15 = int_to_ptr.hbm [resolvable:$true] %s14
      %s16 = sshll.u32 [#allocation2], 4
      %s17 = int_to_ptr.vmem [resolvable:$true] %s16
      %22 = dma.hbm_to_vmem [thread:$0]  %s15, 256, %s17, [#allocation3], 128, 128, 8
    $region5: #{tpu_custom_call.1} parent=1 // pred_fallthru
      _
    // Predicated region
    $region6: #{tpu_custom_call.1} parent=1 // pred_check
      _
    $region7: #{tpu_custom_call.1} parent=1 // pred_check_branch
      %24 = sbr.rel (0) target = $region9
    $region8: #{tpu_custom_call.1} parent=1 // pred_region
      %26 = vsyncadd [#allocation6], 0
      %s28 = sshll.u32 %s1, 4
      %s29 = int_to_ptr.hbm [resolvable:$true] %s28
      %s30 = sshll.u32 [#allocation5], 4
      %s31 = int_to_ptr.vmem [resolvable:$true] %s30
      %33 = dma.hbm_to_vmem [thread:$0]  %s29, 16, %s31, [#allocation6]
    $region9: #{tpu_custom_call.1} parent=1 // pred_fallthru
      _
    // Predicated region
    $region10: #{tpu_custom_call.1} parent=1 // pred_check
      _
    $region11: #{tpu_custom_call.1} parent=1 // pred_check_branch
      %35 = sbr.rel (0) target = $region13
    $region12: #{tpu_custom_call.1} parent=1 // pred_region
      %37 = dma.done [#allocation3], 256
    $region13: #{tpu_custom_call.1} parent=1 // pred_fallthru
      _
    // Predicated region
    $region14: #{tpu_custom_call.1} parent=1 // pred_check
      _
    $region15: #{tpu_custom_call.1} parent=1 // pred_check_branch
      %39 = sbr.rel (0) target = $region17
    $region16: #{tpu_custom_call.1} parent=1 // pred_region
      %41 = dma.done [#allocation6], 16
    $region17: #{tpu_custom_call.1} parent=1 // pred_fallthru
      _
    %v42 = vld [vmem:[#allocation2] sm:$0xff]
    %v43 = vld [vmem:[#allocation2 + $0x8] sm:$0xff]
    %v44 = vmul.f32 %v42, %v42
    %v45 = vmul.f32 %v43, %v43
    %46 = vadd.xlane.f32.xlu0 %v44
    %v47 = vpop.xlane.xlu0 %46
    %48 = vadd.xlane.f32.xlu0 %v45
    %v49 = vpop.xlane.xlu0 %48
    %v50 = vmul.f32 %v47, 0.03125
    %v51 = vmul.f32 %v49, 0.03125
    %v52 = vadd.f32 %v50, 1e-05
    %v53 = vadd.f32 %v51, 1e-05
    %v54 = vrsqrt.pop %v52
    %v55 = vmul.f32 %v54, %v52
    %v56 = vmul.f32 %v55, %v54
    %v57 = vmul.f32 0.5, %v56
    %v58 = vsub.f32 1.5, %v57
    %v59 = vmul.f32 %v54, %v58
    %vm60 = vweird.f32 %v52
    %vm61 = vweird.f32 %v54
    %vm62 = vmor %vm60, %vm61
    %v63 = vsel %vm62, %v54, %v59
    %v64 = vrsqrt.pop %v53
    %v65 = vmul.f32 %v64, %v53
    %v66 = vmul.f32 %v65, %v64
    %v67 = vmul.f32 0.5, %v66
    %v68 = vsub.f32 1.5, %v67
    %v69 = vmul.f32 %v64, %v68
    %vm70 = vweird.f32 %v53
    %vm71 = vweird.f32 %v64
    %vm72 = vmor %vm70, %vm71
    %v73 = vsel %vm72, %v64, %v69
    %v74 = vmul.f32 %v42, %v63
    %v75 = vmul.f32 %v43, %v73
    %v76 = vld [vmem:[#allocation5] sm:$0x1]
    %v78 = vperm.slane %v76, 0
    %v80 = vmul.f32 %v74, %v78
    %v81 = vmul.f32 %v75, %v78
    %82 = vst [vmem:[#allocation7] sm:$0xff] %v80
    %83 = vst [vmem:[#allocation7 + $0x8] sm:$0xff] %v81
    // Predicated region
    $region18: #{tpu_custom_call.1} parent=1 // pred_check
      _
    $region19: #{tpu_custom_call.1} parent=1 // pred_check_branch
      %85 = sbr.rel (0) target = $region21
    $region20: #{tpu_custom_call.1} parent=1 // pred_region
      %87 = vsyncadd [#allocation4], 0
      %s88 = sshll.u32 [#allocation7], 4
      %s89 = int_to_ptr.vmem [resolvable:$true] %s88
      %s90 = sshll.u32 %s2, 4
      %s91 = int_to_ptr.hbm [resolvable:$true] %s90
      %96 = dma.vmem_to_hbm [thread:$0]  %s89, 256, %s91, [#allocation4], 128, 128, 8
    $region21: #{tpu_custom_call.1} parent=1 // pred_fallthru
      _
    // Predicated region
    $region22: #{tpu_custom_call.1} parent=1 // pred_check
      _
    $region23: #{tpu_custom_call.1} parent=1 // pred_check_branch
      %98 = sbr.rel (0) target = $region25
    $region24: #{tpu_custom_call.1} parent=1 // pred_region
      %100 = dma.done [#allocation4], 256
    $region25: #{tpu_custom_call.1} parent=1 // pred_fallthru
      _
    %101 = vsyncpa [#allocation3], 1
    %102 = vsyncpa [#allocation6], 1
    %103 = vsyncpa [#allocation4], 1

</llo_original>
